<compile_context>
chip_gen: v6e
topology: v6e:2x2x1
jax: 0.10.0
libtpu: 0.0.40
codegen_flags: <defaults>
</compile_context>

<pallas_src>
import functools

import jax
import jax.numpy as jnp
from jax.experimental import pallas as pl
from jax.experimental.pallas import tpu as pltpu

_EPS = 1e-12  # L2-norm epsilon (avoids NaN for all-zero embeddings)


# ----------------------------------------------------------------------------
# Fused Pallas kernel: projections + L2 norms + BinaryClassifier + sigmoid.
# Layouts (batch on lanes):
#   x_ref    : [C+E, B]   pooled image (rows 0..C-1) stacked over pooled text
#   wblk_ref : [2D, C+E]  block-diag([W_img_proj^T, W_text_proj^T])
#   wfc_ref  : [2D, 1]    fc weight column (image half first, concat order)
#   b_ref    : [1, 1]     fc bias scalar (SMEM)
#   out_ref  : [1, B]     sigmoid(logits), lane-dense store
# ----------------------------------------------------------------------------
def fused_head_kernel(x_ref, wblk_ref, wfc_ref, b_ref, out_ref, *, d):
    # One MXU push: both projections at once (block-diagonal weight).
    e = jnp.dot(wblk_ref[...], x_ref[...],
                preferred_element_type=jnp.float32)              # [2D, B]

    # Per-half L2 norms over the embedding axis (sublane reduce -> XLU).
    sq = e * e
    inv_img = jax.lax.rsqrt(
        jnp.maximum(jnp.sum(sq[:d], axis=0, keepdims=True), _EPS))   # [1, B]
    inv_txt = jax.lax.rsqrt(
        jnp.maximum(jnp.sum(sq[d:], axis=0, keepdims=True), _EPS))   # [1, B]

    # BinaryClassifier: concat([img_e, txt_e]) @ W^T + b.
    # sum(norm(e_img)*w_img) + sum(norm(e_txt)*w_txt)
    #   == inv_img * sum(e_img*w_img) + inv_txt * sum(e_txt*w_txt)
    contrib = e * wfc_ref[...]                                   # [2D, B] (VPU)
    logits = (jnp.sum(contrib[:d], axis=0, keepdims=True) * inv_img
              + jnp.sum(contrib[d:], axis=0, keepdims=True) * inv_txt
              + b_ref[0, 0])                                     # [1, B]
    out_ref[...] = jax.nn.sigmoid(logits).astype(out_ref.dtype)  # EUP sigmoid


def clip_binary_head_pallas(pooled_img, pooled_txt,
                            w_img_proj, w_text_proj, fc_weight, fc_bias):
    """pooled_img: [B, C], pooled_txt: [B, E],
       w_img_proj: [C, D], w_text_proj: [E, D],
       fc_weight: [1, 2D] (torch nn.Linear layout, image half first), fc_bias: [1]."""
    B = pooled_img.shape[0]
    C, D = w_img_proj.shape
    E = w_text_proj.shape[0]

    # Lane-dense transposed layout: batch on the lane (last) axis everywhere.
    x = jnp.concatenate(
        [pooled_img.T, pooled_txt.T], axis=0).astype(jnp.float32)    # [C+E, B]

    # Block-diagonal projection weight: one matmul computes both embeddings.
    w_blk = jnp.zeros((2 * D, C + E), jnp.float32)
    w_blk = w_blk.at[:D, :C].set(w_img_proj.T.astype(jnp.float32))
    w_blk = w_blk.at[D:, C:].set(w_text_proj.T.astype(jnp.float32))  # [2D, C+E]

    w_fc = fc_weight.astype(jnp.float32).reshape(2 * D, 1)           # [2D, 1]
    b = fc_bias.reshape(1, 1).astype(jnp.float32)                    # scalar -> SMEM

    vmem = pl.BlockSpec(memory_space=pltpu.MemorySpace.VMEM)
    smem = pl.BlockSpec(memory_space=pltpu.MemorySpace.SMEM)

    out_t = pl.pallas_call(
        functools.partial(fused_head_kernel, d=D),
        out_shape=jax.ShapeDtypeStruct((1, B), jnp.float32),
        in_specs=[vmem, vmem, vmem, smem],
        out_specs=vmem,
    )(x, w_blk, w_fc, b)

    return out_t.T                                                   # [B, 1] (torch layout)


# ----------------------------------------------------------------------------
# Deterministic stand-in for the frozen CLIP encoder's pooling (plain JAX).
# TODO(synk): the real pretrained CLIP vision/text transformers are external
#             frozen modules; only their pooled-feature interface is modeled.
# ----------------------------------------------------------------------------
def standin_clip_pooling(params, input_ids, attention_mask, pixel_values):
    tok = params["tok_emb"][input_ids]                           # [B, S, E]
    mask = attention_mask.astype(jnp.float32)[:, :, None]        # [B, S, 1]
    pooled_txt = (tok * mask).sum(axis=1) / jnp.maximum(mask.sum(axis=1), 1.0)  # [B, E]
    pooled_img = pixel_values.mean(axis=(2, 3))                  # [B, C]
    return pooled_img, pooled_txt


# ----------------------------------------------------------------------------
# Full CLIPBinaryModel forward.
# ----------------------------------------------------------------------------
def clip_binary_model_forward(params, input_ids, attention_mask, pixel_values):
    # clip_model.eval() / torch.no_grad(): stand-in encoder is frozen glue.
    pooled_img, pooled_txt = standin_clip_pooling(
        params, input_ids, attention_mask, pixel_values)
    return clip_binary_head_pallas(
        pooled_img, pooled_txt,
        params["w_img_proj"], params["w_text_proj"],
        params["fc_weight"], params["fc_bias"])


def init_params(key, *, vocab=50, text_embed=32, img_channels=3, embed_dim=16):
    """Deterministic synthetic parameters.  feature_dim = 2 * embed_dim."""
    k1, k2, k3, k4, k5 = jax.random.split(key, 5)
    feature_dim = 2 * embed_dim
    bound = 1.0 / jnp.sqrt(feature_dim)   # nn.Linear default init bound
    return {
        "tok_emb": jax.random.normal(k1, (vocab, text_embed), jnp.float32) * 0.02,
        "w_text_proj": jax.random.normal(k2, (text_embed, embed_dim), jnp.float32) * 0.02,
        "w_img_proj": jax.random.normal(k3, (img_channels, embed_dim), jnp.float32) * 0.02,
        # nn.Linear(feature_dim, 1): weight [out=1, in=feature_dim], bias [1]
        "fc_weight": jax.random.uniform(k4, (1, feature_dim), jnp.float32, -bound, bound),
        "fc_bias": jax.random.uniform(k5, (1,), jnp.float32, -bound, bound),
    }


if __name__ == "__main__":
    key = jax.random.PRNGKey(0)
    k_params, k_ids, k_pix = jax.random.split(key, 3)

    B, S, C, H, W = 2, 8, 3, 16, 16
    params = init_params(k_params)

    input_ids = jax.random.randint(k_ids, (B, S), 0, 50, dtype=jnp.int32)
    attention_mask = jnp.ones((B, S), dtype=jnp.int32).at[:, S - 2:].set(0)
    pixel_values = jax.random.normal(k_pix, (B, C, H, W), jnp.float32)

    fwd = jax.jit(clip_binary_model_forward)
    out = fwd(params, input_ids, attention_mask, pixel_values)
    out = jax.block_until_ready(out)

    # Pure-JAX reference for the full head (projections + norms + classifier).
    pooled_img, pooled_txt = standin_clip_pooling(
        params, input_ids, attention_mask, pixel_values)
    img_e = pooled_img @ params["w_img_proj"]
    img_e = img_e / jnp.sqrt(jnp.maximum(jnp.sum(img_e * img_e, -1, keepdims=True), _EPS))
    txt_e = pooled_txt @ params["w_text_proj"]
    txt_e = txt_e / jnp.sqrt(jnp.maximum(jnp.sum(txt_e * txt_e, -1, keepdims=True), _EPS))
    feats = jnp.concatenate([img_e, txt_e], axis=1)
    ref = jax.nn.sigmoid(feats @ params["fc_weight"].T + params["fc_bias"])

    assert out.shape == (B, 1)
    assert jnp.allclose(out, ref, atol=1e-5), "mismatch vs reference"

    print("KERNEL_OK")
</pallas_src>

<mosaic_0001>
module attributes {stable_mosaic.version = 11 : i64} {
  func.func @fused_head_kernel(%arg0: memref<35x2xf32, #tpu.memory_space<vmem>>, %arg1: memref<32x35xf32, #tpu.memory_space<vmem>>, %arg2: memref<32x1xf32, #tpu.memory_space<vmem>>, %arg3: memref<1x1xf32, #tpu.memory_space<smem>>, %arg4: memref<1x2xf32, #tpu.memory_space<vmem>>) attributes {dimension_semantics = [], scalar_prefetch = 0 : i64, scratch_operands = 0 : i64, tpu.core_type = #tpu.core_type<tc>} {
    %c0 = arith.constant 0 : index
    %c0_0 = arith.constant 0 : index
    %0 = vector.load %arg1[%c0, %c0_0] : memref<32x35xf32, #tpu.memory_space<vmem>>, vector<32x35xf32>
    %c0_1 = arith.constant 0 : index
    %c0_2 = arith.constant 0 : index
    %1 = vector.load %arg0[%c0_1, %c0_2] : memref<35x2xf32, #tpu.memory_space<vmem>>, vector<35x2xf32>
    %cst = arith.constant dense<0.000000e+00> : vector<32x2xf32>
    %2 = tpu.matmul %0, %1, %cst {dimension_numbers = #tpu.dot_dimension_numbers<[1], [0], [0], [1], [0, 0, 1, 1], [], []>} : vector<32x35xf32>, vector<35x2xf32>, vector<32x2xf32> -> vector<32x2xf32>
    %3 = arith.mulf %2, %2 : vector<32x2xf32>
    %4 = vector.extract_strided_slice %3 {offsets = [0, 0], sizes = [16, 2], strides = [1, 1]} : vector<32x2xf32> to vector<16x2xf32>
    %cst_3 = arith.constant dense<0.000000e+00> : vector<2xf32>
    %5 = vector.multi_reduction <add>, %4, %cst_3 [0] : vector<16x2xf32> to vector<2xf32>
    %6 = vector.shape_cast %5 : vector<2xf32> to vector<1x2xf32>
    %cst_4 = arith.constant 9.99999996E-13 : f32
    %7 = vector.broadcast %cst_4 : f32 to vector<1x2xf32>
    %8 = arith.maximumf %6, %7 : vector<1x2xf32>
    %9 = math.rsqrt %8 : vector<1x2xf32>
    %10 = vector.extract_strided_slice %3 {offsets = [16, 0], sizes = [16, 2], strides = [1, 1]} : vector<32x2xf32> to vector<16x2xf32>
    %cst_5 = arith.constant dense<0.000000e+00> : vector<2xf32>
    %11 = vector.multi_reduction <add>, %10, %cst_5 [0] : vector<16x2xf32> to vector<2xf32>
    %12 = vector.shape_cast %11 : vector<2xf32> to vector<1x2xf32>
    %cst_6 = arith.constant 9.99999996E-13 : f32
    %13 = vector.broadcast %cst_6 : f32 to vector<1x2xf32>
    %14 = arith.maximumf %12, %13 : vector<1x2xf32>
    %15 = math.rsqrt %14 : vector<1x2xf32>
    %c0_7 = arith.constant 0 : index
    %c0_8 = arith.constant 0 : index
    %16 = vector.load %arg2[%c0_7, %c0_8] : memref<32x1xf32, #tpu.memory_space<vmem>>, vector<32x1xf32>
    %17 = vector.broadcast %16 : vector<32x1xf32> to vector<32x2xf32>
    %18 = arith.mulf %2, %17 : vector<32x2xf32>
    %19 = vector.extract_strided_slice %18 {offsets = [0, 0], sizes = [16, 2], strides = [1, 1]} : vector<32x2xf32> to vector<16x2xf32>
    %cst_9 = arith.constant dense<0.000000e+00> : vector<2xf32>
    %20 = vector.multi_reduction <add>, %19, %cst_9 [0] : vector<16x2xf32> to vector<2xf32>
    %21 = vector.shape_cast %20 : vector<2xf32> to vector<1x2xf32>
    %22 = arith.mulf %21, %9 : vector<1x2xf32>
    %23 = vector.extract_strided_slice %18 {offsets = [16, 0], sizes = [16, 2], strides = [1, 1]} : vector<32x2xf32> to vector<16x2xf32>
    %cst_10 = arith.constant dense<0.000000e+00> : vector<2xf32>
    %24 = vector.multi_reduction <add>, %23, %cst_10 [0] : vector<16x2xf32> to vector<2xf32>
    %25 = vector.shape_cast %24 : vector<2xf32> to vector<1x2xf32>
    %26 = arith.mulf %25, %15 : vector<1x2xf32>
    %27 = arith.addf %22, %26 : vector<1x2xf32>
    %c0_11 = arith.constant 0 : index
    %c0_12 = arith.constant 0 : index
    %28 = memref.load %arg3[%c0_11, %c0_12] : memref<1x1xf32, #tpu.memory_space<smem>>
    %29 = vector.broadcast %28 : f32 to vector<1x2xf32>
    %30 = arith.addf %27, %29 : vector<1x2xf32>
    %31 = arith.negf %30 : vector<1x2xf32>
    %32 = math.exp %31 : vector<1x2xf32>
    %cst_13 = arith.constant 1.000000e+00 : f32
    %33 = vector.broadcast %cst_13 : f32 to vector<1x2xf32>
    %34 = arith.addf %33, %32 : vector<1x2xf32>
    %35 = arith.divf %33, %34 : vector<1x2xf32>
    %c0_14 = arith.constant 0 : index
    %c0_15 = arith.constant 0 : index
    %36 = vector.load %arg4[%c0_14, %c0_15] : memref<1x2xf32, #tpu.memory_space<vmem>>, vector<1x2xf32>
    tpu.vector_store %arg4[%c0_14, %c0_15], %35 {strides = array<i32>} : memref<1x2xf32, #tpu.memory_space<vmem>>, vector<1x2xf32>,
    return
  }
}

</mosaic_0001>

<llo_original>
// kernel: clip_binary_model_forward.1
$region0: #{clip_binary_model_forward.1}
  #allocation0 [shape = 'u32[]', space=smem, size = 0x4, offset = 0x4, fixed_abs, tag = 'smem constant byte address 0x4 - core index']
  #allocation1 [shape = 'u32[144,128]{1,0:T(1,128)}', space=vmem, size = 0x12000, scoped, tag = 'internal scratch']
  #allocation2 [shape = 'f32[1,1]{1,0:T(1,128)S(6)}', space=smem, size = 0x200, scoped, tag = 'scoped memory for clip_binary_model_forward.1']
  %s0 = inlined_call_operand.vmem [shape: f32[35,2], index: 0, kind: input, shape index: {}]
  %s1 = inlined_call_operand.vmem [shape: f32[32,35], index: 1, kind: input, shape index: {}]
  %s2 = inlined_call_operand.vmem [shape: f32[32,1], index: 2, kind: input, shape index: {}]
  %s3 = inlined_call_operand.<no memory space> [shape: f32[1,1], index: 3, kind: input, shape index: {}]
  %s4 = inlined_call_operand.hbm [shape: f32[1,2], index: 4, kind: output, shape index: {}]
  %s5 = sld [smem:[#allocation0]]
  $region26: #{clip_binary_model_forward.1} parent=0
    _
  %s7 = ssub.s32 1, %s5
  %s8 = scalar_select 0, %s7, %s5
  %9 = sst [smem:[#allocation2]] %s3
  $region1: #{clip_binary_model_forward.1} parent=0
    #allocation3 [shape = 'u8[512]{0}', space=vmem, size = 0x400, scoped, tag = 'output window, operand 0, single buffered']
    #allocation4 [shape = 's32[1]{0}', space=sflag, size = 0x4, scoped, tag = 'scoped memory for clip_binary_model_forward.1']
    %10 = vsyncpa [#allocation4], 0
    // Predicated region
    $region2: #{clip_binary_model_forward.1} parent=1 // pred_check
      _
    $region3: #{clip_binary_model_forward.1} parent=1 // pred_check_branch
      %12 = sbr.rel (0) target = $region5
    $region4: #{clip_binary_model_forward.1} parent=1 // pred_region
      _
    $region5: #{clip_binary_model_forward.1} parent=1 // pred_fallthru
      _
    // Predicated region
    $region6: #{clip_binary_model_forward.1} parent=1 // pred_check
      _
    $region7: #{clip_binary_model_forward.1} parent=1 // pred_check_branch
      %14 = sbr.rel (0) target = $region9
    $region8: #{clip_binary_model_forward.1} parent=1 // pred_region
      _
    $region9: #{clip_binary_model_forward.1} parent=1 // pred_fallthru
      _
    // Predicated region
    $region10: #{clip_binary_model_forward.1} parent=1 // pred_check
      _
    $region11: #{clip_binary_model_forward.1} parent=1 // pred_check_branch
      %16 = sbr.rel (0) target = $region13
    $region12: #{clip_binary_model_forward.1} parent=1 // pred_region
      _
    $region13: #{clip_binary_model_forward.1} parent=1 // pred_fallthru
      _
    // Predicated region
    $region14: #{clip_binary_model_forward.1} parent=1 // pred_check
      _
    $region15: #{clip_binary_model_forward.1} parent=1 // pred_check_branch
      %18 = sbr.rel (0) target = $region17
    $region16: #{clip_binary_model_forward.1} parent=1 // pred_region
      _
    $region17: #{clip_binary_model_forward.1} parent=1 // pred_fallthru
      _
    %v19 = vld [vmem:[%s1] sm:$0xff]
    %v20 = vld [vmem:[%s1 + $0x8] sm:$0xff]
    %v21 = vld [vmem:[%s1 + $0x10] sm:$0xff]
    %v22 = vld [vmem:[%s1 + $0x18] sm:$0xff]
    %v23 = vld [vmem:[%s0] sm:$0xff]
    %v24 = vld [vmem:[%s0 + $0x8] sm:$0xff]
    %v25 = vld [vmem:[%s0 + $0x10] sm:$0xff]
    %v26 = vld [vmem:[%s0 + $0x18] sm:$0xff]
    %v27 = vld [vmem:[%s0 + $0x20] sm:$0x7]
    %vm28 = vcmask 285696
    %v30 = vsel %vm28, %v19, 0
    %v33 = vsel %vm28, %v20, 0
    %v36 = vsel %vm28, %v21, 0
    %v39 = vsel %vm28, %v22, 0
    %vm41 = vcmask 1042432
    %v43 = vsel %vm41, %v27, 0
    %45 = vmatprep.subr.mxu0 0.0
    %46 = vmatpush1.msra.mxu0 0.0
    %47 = vmatprep.subr.mxu0 0.0
    %48 = vmatpush1.msra.mxu0 0.0
    %49 = vmatprep.subr.mxu0 0.0
    %50 = vmatpush1.msra.mxu0 0.0
    %51 = vmatprep.subr.mxu0 0.0
    %52 = vmatpush1.msra.mxu0 0.0
    %53 = vmatprep.subr.mxu0 0.0
    %54 = vmatpush1.msra.mxu0 0.0
    %55 = vmatprep.subr.mxu0 0.0
    %56 = vmatpush1.msra.mxu0 0.0
    %57 = vmatprep.subr.mxu0 0.0
    %58 = vmatpush1.msra.mxu0 0.0
    %59 = vmatprep.subr.mxu0 0.0
    %60 = vmatpush1.msra.mxu0 0.0
    %61 = vmatprep.subr.mxu0 0.0
    %62 = vmatpush1.msra.mxu0 0.0
    %63 = vmatprep.subr.mxu0 0.0
    %64 = vmatpush1.msra.mxu0 0.0
    %65 = vmatprep.subr.mxu0 0.0
    %66 = vmatpush1.msra.mxu0 0.0
    %67 = vmatprep.subr.mxu0 0.0
    %68 = vmatpush1.msra.mxu0 %v43
    %69 = vmatprep.subr.mxu0 0.0
    %70 = vmatpush1.msra.mxu0 %v26
    %71 = vmatprep.subr.mxu0 0.0
    %72 = vmatpush1.msra.mxu0 %v25
    %73 = vmatprep.subr.mxu0 0.0
    %74 = vmatpush1.msra.mxu0 %v24
    %75 = vmatprep.subr.mxu0 0.0
    %76 = vmatpush1.msra.mxu0 %v23
    %77 = vmatprep.subr.mxu0 0.0
    %78 = vmatpush2.msra.mxu0 0.0
    %79 = vmatprep.subr.mxu0 0.0
    %80 = vmatpush2.msra.mxu0 0.0
    %81 = vmatprep.subr.mxu0 0.0
    %82 = vmatpush2.msra.mxu0 0.0
    %83 = vmatprep.subr.mxu0 0.0
    %84 = vmatpush2.msra.mxu0 0.0
    %85 = vmatprep.subr.mxu0 0.0
    %86 = vmatpush2.msra.mxu0 0.0
    %87 = vmatprep.subr.mxu0 0.0
    %88 = vmatpush2.msra.mxu0 0.0
    %89 = vmatprep.subr.mxu0 0.0
    %90 = vmatpush2.msra.mxu0 0.0
    %91 = vmatprep.subr.mxu0 0.0
    %92 = vmatpush2.msra.mxu0 0.0
    %93 = vmatprep.subr.mxu0 0.0
    %94 = vmatpush2.msra.mxu0 0.0
    %95 = vmatprep.subr.mxu0 0.0
    %96 = vmatpush2.msra.mxu0 0.0
    %97 = vmatprep.subr.mxu0 0.0
    %98 = vmatpush2.msra.mxu0 0.0
    %99 = vmatprep.subr.mxu0 0.0
    %100 = vmatpush2.msra.mxu0 0.0
    %101 = vmatprep.subr.mxu0 0.0
    %102 = vmatpush2.msra.mxu0 0.0
    %103 = vmatprep.subr.mxu0 0.0
    %104 = vmatpush2.msra.mxu0 0.0
    %105 = vmatprep.subr.mxu0 0.0
    %106 = vmatpush2.msra.mxu0 0.0
    %107 = vmatprep.subr.mxu0 0.0
    %108 = vmatpush2.msra.mxu0 0.0
    %109 = vmatprep.mubr.f32.mxu0 0.0
    %110 = vmatmul.mubr.f32.gmra.mxu0 %v30
    %v111 = vpop.f32.mrf.mxu0
    %v112 = vadd.f32 0.0, %v111
    %v113 = vpop.f32.mrf.mxu0
    %114 = vmatprep.mubr.f32.mxu0 0.0
    %115 = vmatmul.mubr.f32.gmra.mxu0 %v33
    %v116 = vpop.f32.mrf.mxu0
    %v117 = vadd.f32 0.0, %v116
    %v118 = vpop.f32.mrf.mxu0
    %119 = vmatprep.mubr.f32.mxu0 0.0
    %120 = vmatmul.mubr.f32.gmra.mxu0 %v36
    %v121 = vpop.f32.mrf.mxu0
    %v122 = vadd.f32 0.0, %v121
    %v123 = vpop.f32.mrf.mxu0
    %124 = vmatprep.mubr.f32.mxu0 0.0
    %125 = vmatmul.mubr.f32.gmra.mxu0 %v39
    %v126 = vpop.f32.mrf.mxu0
    %v127 = vadd.f32 0.0, %v126
    %v128 = vpop.f32.mrf.mxu0
    %129 = vdwg.mxu0
    %v130 = vmul.f32 %v112, %v112
    %v131 = vmul.f32 %v117, %v117
    %v132 = vmul.f32 %v122, %v122
    %v133 = vmul.f32 %v127, %v127
    %vm134 = vcmask 15360
    %v135 = vsel %vm134, %v130, 0.0
    %v136 = vsel %vm134, %v131, 0.0
    %v137 = vadd.f32 %v135, %v136
    %v138 = vrot.slane %v137, 4
    %v139 = vadd.f32 %v137, %v138
    %v140 = vrot.slane %v139, 2
    %v141 = vadd.f32 %v139, %v140
    %v142 = vrot.slane %v141, 1
    %v143 = vadd.f32 %v141, %v142
    %v144 = vmax.f32 %v143, 1e-12
    %v145 = vrsqrt.pop %v144
    %v146 = vsel %vm134, %v132, 0.0
    %v147 = vsel %vm134, %v133, 0.0
    %v148 = vadd.f32 %v146, %v147
    %v149 = vrot.slane %v148, 4
    %v150 = vadd.f32 %v148, %v149
    %v151 = vrot.slane %v150, 2
    %v152 = vadd.f32 %v150, %v151
    %v153 = vrot.slane %v152, 1
    %v154 = vadd.f32 %v152, %v153
    %v155 = vmax.f32 %v154, 1e-12
    %v156 = vrsqrt.pop %v155
    %v157 = vld [vmem:[%s2] sm:$0xff]
    %v158 = vld [vmem:[%s2 + $0x8] sm:$0xff]
    %v159 = vld [vmem:[%s2 + $0x10] sm:$0xff]
    %v160 = vld [vmem:[%s2 + $0x18] sm:$0xff]
    %162 = vset.pattern.permute.xlu0 0
    %163 = vperm.xlu0 %162, %v157
    %v164 = vpop.permute.xlu0 %163
    %167 = vset.pattern.permute.xlu0 0
    %168 = vperm.xlu0 %167, %v158
    %v169 = vpop.permute.xlu0 %168
    %172 = vset.pattern.permute.xlu0 0
    %173 = vperm.xlu0 %172, %v159
    %v174 = vpop.permute.xlu0 %173
    %177 = vset.pattern.permute.xlu0 0
    %178 = vperm.xlu0 %177, %v160
    %v179 = vpop.permute.xlu0 %178
    %v181 = vmul.f32 %v112, %v164
    %v182 = vmul.f32 %v117, %v169
    %v183 = vmul.f32 %v122, %v174
    %v184 = vmul.f32 %v127, %v179
    %v185 = vsel %vm134, %v181, 0.0
    %v186 = vsel %vm134, %v182, 0.0
    %v187 = vadd.f32 %v185, %v186
    %v188 = vrot.slane %v187, 4
    %v189 = vadd.f32 %v187, %v188
    %v190 = vrot.slane %v189, 2
    %v191 = vadd.f32 %v189, %v190
    %v192 = vrot.slane %v191, 1
    %v193 = vadd.f32 %v191, %v192
    %v194 = vmul.f32 %v193, %v145
    %v195 = vsel %vm134, %v183, 0.0
    %v196 = vsel %vm134, %v184, 0.0
    %v197 = vadd.f32 %v195, %v196
    %v198 = vrot.slane %v197, 4
    %v199 = vadd.f32 %v197, %v198
    %v200 = vrot.slane %v199, 2
    %v201 = vadd.f32 %v199, %v200
    %v202 = vrot.slane %v201, 1
    %v203 = vadd.f32 %v201, %v202
    %v204 = vmul.f32 %v203, %v156
    %v205 = vadd.f32 %v194, %v204
    %s206 = sld [smem:[#allocation2]]
    %v207 = vstv %s206
    %v208 = vadd.f32 %v205, %v207
    %v209 = vxor.u32 %v208, 2147483648
    %v210 = vmul.f32 %v209, 1.442695
    %v211 = vpow.pop %v210
    %v212 = vadd.f32 %v211, 1.0
    %v213 = vrcp.pop %v212
    %v214 = vmul.f32 1.0, %v213
    %vm215 = vcmask 8192
    %216 = vst.msk [vmem:[#allocation3] sm:$0x1] %vm215, %v214
    // Predicated region
    $region18: #{clip_binary_model_forward.1} parent=1 // pred_check
      _
    $region19: #{clip_binary_model_forward.1} parent=1 // pred_check_branch
      %218 = sbr.rel (0) target = $region21
    $region20: #{clip_binary_model_forward.1} parent=1 // pred_region
      %s220 = ssub.s32 16, 16
      %221 = vsyncadd [#allocation4], %s220
      %s223 = sshll.u32 [#allocation3], 4
      %s224 = int_to_ptr.vmem [resolvable:$true] %s223
      %226 = dma.vmem_to_hbm [thread:$0]  %s224, 16, %s4, [#allocation4]
    $region21: #{clip_binary_model_forward.1} parent=1 // pred_fallthru
      _
    // Predicated region
    $region22: #{clip_binary_model_forward.1} parent=1 // pred_check
      _
    $region23: #{clip_binary_model_forward.1} parent=1 // pred_check_branch
      %228 = sbr.rel (0) target = $region25
    $region24: #{clip_binary_model_forward.1} parent=1 // pred_region
      %229 = dma.done [#allocation4], 16
    $region25: #{clip_binary_model_forward.1} parent=1 // pred_fallthru
      _
    %230 = vsyncpa [#allocation4], 1

</llo_original>
